<compile_context>
chip_gen: v7x
topology: tpu7x:2x2x1
jax: 0.10.0
libtpu: 0.0.40
codegen_flags: <defaults>
</compile_context>

<pallas_src>
import jax
import jax.numpy as jnp
from jax.experimental import pallas as pl
from jax.experimental.pallas import tpu as pltpu

IN_DIM = 20
HID_DIM = 256
OUT_DIM = 10
LANE_PAD = 128   # lane-dense padded output width (multiple of 128 lanes)
SUBLANE = 16     # batch-tile granularity (bf16 native sublane tile is (16, 128))


def _round_up(n, m):
    return ((n + m - 1) // m) * m


def mlp_kernel(x_ref, w1_ref, b1_ref, w2_ref, b2_ref, o_ref):
    # x arrives f32; cast to bf16 on the VPU right before the MXU (free under
    # the DMA bound, avoids a separate wrapper-side cast pass over x in HBM).
    x = x_ref[...].astype(jnp.bfloat16)
    # hidden layer: (TB, 20) bf16 @ (20, 256) bf16 -> f32 accumulation on MXU
    h = jnp.dot(x, w1_ref[...], preferred_element_type=jnp.float32)
    h = jnp.maximum(h + b1_ref[...], 0.0)            # bias + ReLU (f32, VPU)
    # output layer: (TB, 256) bf16 @ (256, 128) bf16 -> f32
    y = jnp.dot(h.astype(jnp.bfloat16), w2_ref[...],
                preferred_element_type=jnp.float32)
    # bf16, lane-dense (128-wide, unmasked vst) writeback.
    o_ref[...] = (y + b2_ref[...]).astype(o_ref.dtype)


def mlp_forward(x, w1, b1, w2, b2, *, tile_b=4096):
    """x: (B, 20) f32. w1: (20, 256), b1: (1, 256), w2: (256, 10), b2: (1, 10).

    Weights are stored pre-transposed as (in, out) == PyTorch weight.T so the
    kernel computes y = x @ W + b. Returns (B, 10) f32.
    """
    B = x.shape[0]

    # Lane-dense output path: pad N from 10 -> 128 zero columns (wrapper-side).
    w2p = jnp.pad(w2, ((0, 0), (0, LANE_PAD - OUT_DIM)))
    b2p = jnp.pad(b2, ((0, 0), (0, LANE_PAD - OUT_DIM)))

    # Weights cast to bf16 once (tiny, VMEM-resident); x stays f32.
    w1b = w1.astype(jnp.bfloat16)
    w2b = w2p.astype(jnp.bfloat16)

    # Batch tile: multiple of 16 sublanes, capped at ~ceil(B/2) so the grid has
    # at least 2 steps whenever possible (v7x shards "parallel" axis over TCs).
    cap = max(SUBLANE, _round_up(-(-B // 2), SUBLANE))
    tile_b = max(SUBLANE, min(_round_up(tile_b, SUBLANE), cap))
    b_pad = _round_up(B, tile_b)
    xb = jnp.pad(x, ((0, b_pad - B), (0, 0))) if b_pad != B else x

    grid = (b_pad // tile_b,)

    cost = pl.CostEstimate(
        flops=2 * b_pad * (IN_DIM * HID_DIM + HID_DIM * LANE_PAD),
        transcendentals=0,
        bytes_accessed=(b_pad * IN_DIM * 4            # x read (f32)
                        + b_pad * LANE_PAD * 2        # out write (bf16)
                        + (IN_DIM * HID_DIM + HID_DIM * LANE_PAD) * 2  # weights
                        + (HID_DIM + LANE_PAD) * 4))  # biases

    out = pl.pallas_call(
        mlp_kernel,
        out_shape=jax.ShapeDtypeStruct((b_pad, LANE_PAD), jnp.bfloat16),
        grid=grid,
        in_specs=[
            pl.BlockSpec((tile_b, IN_DIM), lambda i: (i, 0)),     # x tile
            pl.BlockSpec((IN_DIM, HID_DIM), lambda i: (0, 0)),    # w1 resident
            pl.BlockSpec((1, HID_DIM), lambda i: (0, 0)),         # b1 resident
            pl.BlockSpec((HID_DIM, LANE_PAD), lambda i: (0, 0)),  # w2 resident
            pl.BlockSpec((1, LANE_PAD), lambda i: (0, 0)),        # b2 resident
        ],
        out_specs=pl.BlockSpec((tile_b, LANE_PAD), lambda i: (i, 0)),
        compiler_params=pltpu.CompilerParams(
            dimension_semantics=("parallel",),        # v7x: batch over 2 TCs
            vmem_limit_bytes=48 * 1024 * 1024),       # fits v5e/v6e/v7x budgets
        cost_estimate=cost,
    )(xb, w1b, b1, w2b, b2p)

    # Slice off batch/lane padding; upcast fuses into the same small pass.
    return out[:B, :OUT_DIM].astype(jnp.float32)


def init_params(key):
    """Deterministic init matching PyTorch nn.Linear default (uniform +/- 1/sqrt(fan_in))."""
    k1, k2, k3, k4 = jax.random.split(key, 4)
    bound1 = 1.0 / jnp.sqrt(IN_DIM)
    bound2 = 1.0 / jnp.sqrt(HID_DIM)
    # weights stored as (in, out) == PyTorch weight.T
    w1 = jax.random.uniform(k1, (IN_DIM, HID_DIM), jnp.float32, -bound1, bound1)
    b1 = jax.random.uniform(k2, (1, HID_DIM), jnp.float32, -bound1, bound1)
    w2 = jax.random.uniform(k3, (HID_DIM, OUT_DIM), jnp.float32, -bound2, bound2)
    b2 = jax.random.uniform(k4, (1, OUT_DIM), jnp.float32, -bound2, bound2)
    return w1, b1, w2, b2


if __name__ == "__main__":
    key = jax.random.PRNGKey(0)
    kx, kp = jax.random.split(key)

    # Small test shapes; B=48 with tile_b=16 exercises a 3-step batch grid,
    # the default tile exercises the >=2-step cap + batch padding path.
    B = 48
    x = jax.random.normal(kx, (B, IN_DIM), jnp.float32)
    w1, b1, w2, b2 = init_params(kp)

    out = jax.block_until_ready(mlp_forward(x, w1, b1, w2, b2, tile_b=16))
    out_default = jax.block_until_ready(mlp_forward(x, w1, b1, w2, b2))
    assert out.shape == (B, OUT_DIM)
    assert out_default.shape == (B, OUT_DIM)

    # Reference with the same bf16 casts + f32 accumulation + bf16 writeback.
    xb16 = x.astype(jnp.bfloat16).astype(jnp.float32)
    w1b = w1.astype(jnp.bfloat16).astype(jnp.float32)
    w2b = w2.astype(jnp.bfloat16).astype(jnp.float32)
    h_ref = jnp.maximum(xb16 @ w1b + b1, 0.0)
    y_ref = h_ref.astype(jnp.bfloat16).astype(jnp.float32) @ w2b + b2
    ref = y_ref.astype(jnp.bfloat16).astype(jnp.float32)
    assert jnp.allclose(out, ref, atol=5e-3, rtol=5e-3)
    assert jnp.allclose(out_default, ref, atol=5e-3, rtol=5e-3)

    # Loose sanity check against the pure-f32 forward pass.
    ref_f32 = jnp.maximum(x @ w1 + b1, 0.0) @ w2 + b2
    assert jnp.allclose(out, ref_f32, atol=5e-2, rtol=5e-2)

    print("KERNEL_OK")
</pallas_src>

<mosaic_0001>
module attributes {stable_mosaic.version = 11 : i64} {
  func.func @mlp_kernel(%arg0: i32, %arg1: memref<16x20xf32, #tpu.memory_space<vmem>>, %arg2: memref<20x256xbf16, #tpu.memory_space<vmem>>, %arg3: memref<1x256xf32, #tpu.memory_space<vmem>>, %arg4: memref<256x128xbf16, #tpu.memory_space<vmem>>, %arg5: memref<1x128xf32, #tpu.memory_space<vmem>>, %arg6: memref<16x128xbf16, #tpu.memory_space<vmem>>) attributes {dimension_semantics = [#tpu.dimension_semantics<parallel>], iteration_bounds = array<i64: 3>, scalar_prefetch = 0 : i64, scratch_operands = 0 : i64, tpu.core_type = #tpu.core_type<tc>, window_params = [{transform_indices = @transform_0, window_bounds = array<i64: 16, 20>}, {pipeline_mode = #tpu.pipeline_mode<synchronous>, transform_indices = @transform_1, window_bounds = array<i64: 20, 256>}, {pipeline_mode = #tpu.pipeline_mode<synchronous>, transform_indices = @transform_2, window_bounds = array<i64: 1, 256>}, {pipeline_mode = #tpu.pipeline_mode<synchronous>, transform_indices = @transform_3, window_bounds = array<i64: 256, 128>}, {pipeline_mode = #tpu.pipeline_mode<synchronous>, transform_indices = @transform_4, window_bounds = array<i64: 1, 128>}, {transform_indices = @transform_5, window_bounds = array<i64: 16, 128>}]} {
    %c0 = arith.constant 0 : index
    %c0_0 = arith.constant 0 : index
    %0 = vector.load %arg1[%c0, %c0_0] : memref<16x20xf32, #tpu.memory_space<vmem>>, vector<16x20xf32>
    %1 = arith.truncf %0 : vector<16x20xf32> to vector<16x20xbf16>
    %c0_1 = arith.constant 0 : index
    %c0_2 = arith.constant 0 : index
    %2 = vector.load %arg2[%c0_1, %c0_2] : memref<20x256xbf16, #tpu.memory_space<vmem>>, vector<20x256xbf16>
    %cst = arith.constant dense<0.000000e+00> : vector<16x256xf32>
    %3 = tpu.matmul %1, %2, %cst {dimension_numbers = #tpu.dot_dimension_numbers<[1], [0], [0], [1], [0, 0, 1, 1], [], []>} : vector<16x20xbf16>, vector<20x256xbf16>, vector<16x256xf32> -> vector<16x256xf32>
    %c0_3 = arith.constant 0 : index
    %c0_4 = arith.constant 0 : index
    %4 = vector.load %arg3[%c0_3, %c0_4] : memref<1x256xf32, #tpu.memory_space<vmem>>, vector<1x256xf32>
    %5 = vector.broadcast %4 : vector<1x256xf32> to vector<16x256xf32>
    %6 = arith.addf %3, %5 : vector<16x256xf32>
    %cst_5 = arith.constant 0.000000e+00 : f32
    %7 = vector.broadcast %cst_5 : f32 to vector<16x256xf32>
    %8 = arith.maximumf %6, %7 : vector<16x256xf32>
    %9 = arith.truncf %8 : vector<16x256xf32> to vector<16x256xbf16>
    %c0_6 = arith.constant 0 : index
    %c0_7 = arith.constant 0 : index
    %10 = vector.load %arg4[%c0_6, %c0_7] : memref<256x128xbf16, #tpu.memory_space<vmem>>, vector<256x128xbf16>
    %cst_8 = arith.constant dense<0.000000e+00> : vector<16x128xf32>
    %11 = tpu.matmul %9, %10, %cst_8 {dimension_numbers = #tpu.dot_dimension_numbers<[1], [0], [0], [1], [0, 0, 1, 1], [], []>} : vector<16x256xbf16>, vector<256x128xbf16>, vector<16x128xf32> -> vector<16x128xf32>
    %c0_9 = arith.constant 0 : index
    %c0_10 = arith.constant 0 : index
    %12 = vector.load %arg5[%c0_9, %c0_10] : memref<1x128xf32, #tpu.memory_space<vmem>>, vector<1x128xf32>
    %13 = vector.broadcast %12 : vector<1x128xf32> to vector<16x128xf32>
    %14 = arith.addf %11, %13 : vector<16x128xf32>
    %15 = arith.truncf %14 : vector<16x128xf32> to vector<16x128xbf16>
    %c0_11 = arith.constant 0 : index
    %c0_12 = arith.constant 0 : index
    %16 = vector.load %arg6[%c0_11, %c0_12] : memref<16x128xbf16, #tpu.memory_space<vmem>>, vector<16x128xbf16>
    tpu.vector_store %arg6[%c0_11, %c0_12], %15 {strides = array<i32>} : memref<16x128xbf16, #tpu.memory_space<vmem>>, vector<16x128xbf16>,
    return
  }
  func.func @transform_0(%arg0: i32) -> (i32, i32) {
    %c0_i32 = arith.constant 0 : i32
    %c0_i32_0 = arith.constant 0 : i32
    return %arg0, %c0_i32 : i32, i32
  }
  func.func @transform_1(%arg0: i32) -> (i32, i32) {
    %c0_i32 = arith.constant 0 : i32
    %c0_i32_0 = arith.constant 0 : i32
    %c0_i32_1 = arith.constant 0 : i32
    return %c0_i32, %c0_i32_0 : i32, i32
  }
  func.func @transform_2(%arg0: i32) -> (i32, i32) {
    %c0_i32 = arith.constant 0 : i32
    %c0_i32_0 = arith.constant 0 : i32
    %c0_i32_1 = arith.constant 0 : i32
    return %c0_i32, %c0_i32_0 : i32, i32
  }
  func.func @transform_3(%arg0: i32) -> (i32, i32) {
    %c0_i32 = arith.constant 0 : i32
    %c0_i32_0 = arith.constant 0 : i32
    %c0_i32_1 = arith.constant 0 : i32
    return %c0_i32, %c0_i32_0 : i32, i32
  }
  func.func @transform_4(%arg0: i32) -> (i32, i32) {
    %c0_i32 = arith.constant 0 : i32
    %c0_i32_0 = arith.constant 0 : i32
    %c0_i32_1 = arith.constant 0 : i32
    return %c0_i32, %c0_i32_0 : i32, i32
  }
  func.func @transform_5(%arg0: i32) -> (i32, i32) {
    %c0_i32 = arith.constant 0 : i32
    %c0_i32_0 = arith.constant 0 : i32
    return %arg0, %c0_i32 : i32, i32
  }
}

</mosaic_0001>

<llo_original>
// kernel: tpu_custom_call.1
$region0: #{tpu_custom_call.1}
  #allocation0 [shape = 'u32[]', space=smem, size = 0x4, offset = 0x4, fixed_abs, tag = 'smem constant byte address 0x4 - core index']
  #allocation1 [shape = 'u32[144,128]{1,0:T(1,128)}', space=vmem, size = 0x12000, scoped, tag = 'internal scratch']
  %s0 = inlined_call_operand.vmem [shape: f32[48,20], index: 0, kind: input, shape index: {}]
  %s1 = inlined_call_operand.vmem [shape: bf16[20,256], index: 1, kind: input, shape index: {}]
  %s2 = inlined_call_operand.vmem [shape: f32[1,256], index: 2, kind: input, shape index: {}]
  %s3 = inlined_call_operand.hbm [shape: bf16[256,128], index: 3, kind: input, shape index: {}]
  %s4 = inlined_call_operand.vmem [shape: f32[1,128], index: 4, kind: input, shape index: {}]
  %s5 = inlined_call_operand.hbm [shape: bf16[48,128], index: 5, kind: output, shape index: {}]
  %s6 = sld [smem:[#allocation0]]
  $region57: #{tpu_custom_call.1} parent=0
    _
  %s8 = ssub.s32 1, %s6
  %s9 = scalar_select 0, %s8, %s6
  $region1: #{tpu_custom_call.1} parent=0
    #allocation2 [shape = 'u8[65536]{0}', space=vmem, size = 0x10000, scoped, tag = 'input window, operand 3, single buffered']
    #allocation3 [shape = 's32[2]{0}', space=sflag, size = 0x8, scoped, tag = 'scoped memory for tpu_custom_call.1']
    #allocation4 [shape = 's32[2]{0}', space=sflag, size = 0x8, scoped, tag = 'scoped memory for tpu_custom_call.1']
    #allocation5 [shape = 'u8[8192]{0}', space=vmem, size = 0x2000, scoped, tag = 'output window, operand 0']
    %10 = vsyncpa [#allocation3], 0
    %11 = vsyncpa [#allocation4], 0
    %s12 = scalar_lea.sflag [#allocation4], 1
    %13 = vsyncpa %s12, 0
    loop: start=0, step=1, limit=5
    $region2: #{tpu_custom_call.1} parent=1 // loop_pre_header
      _
    $region3: #{tpu_custom_call.1} parent=1 // loop_header
      %s15 = sphi 0, %s19
      %p16 = scmp.ge.s32.totalorder %s15, 5
      %s25 = sphi 0, %s27
      %s28 = sphi 0, %s25
      %s29 = sphi 0, %s28
      %s45 = sphi 0, %s29
      %s49 = sphi 0, %s49
      %s51 = sphi 0, %s49
      %s52 = sphi 0, %s51
      %s66 = sphi 0, %s52
      %s70 = sphi 0, %s70
      %s72 = sphi 0, %s70
      %s73 = sphi 0, %s72
      %s87 = sphi 0, %s73
      %s91 = sphi 0, %s91
      %s93 = sphi 0, %s91
      %s94 = sphi 0, %s93
      %s108 = sphi 0, %s94
      %s112 = sphi 0, %s112
      %s114 = sphi 0, %s112
      %s115 = sphi 0, %s114
      %s129 = sphi 0, %s115
      %s135 = sphi 0, %s137
      %s138 = sphi 0, %s135
      %s139 = sphi 0, %s138
      %s155 = sphi 0, %s139
    $region4: #{tpu_custom_call.1} parent=1 // loop_header_branch
      %18 = sbr.rel (%p16) target = $region8
    $region5: #{tpu_custom_call.1} parent=1 // loop_body
      %s20 = ssub.s32 %s15, 1
      %s21 = ssub.s32 %s15, 2
      %s22 = sadd.s32 %s15, 1
      %s23 = ssub.s32 %s15, %s22
      %p24 = scmp.eq.s32.totalorder %s23, 0
      %s26 = sadd.s32 %s25, 1
      %s27 = scalar_select %p24, %s25, %s26
      %p30 = pneg %p24
      %p31 = scmp.eq.s32.totalorder %s15, 2
      %p32 = por %p30, %p31
      %p33 = scmp.ne.s32.totalorder %s25, %s28
      %p34 = scmp.eq.s32.totalorder %s15, 0
      %p35 = por %p33, %p34
      %p36 = scmp.ne.s32.totalorder %s25, %s28
      %p37 = scmp.eq.s32.totalorder %s20, 2
      %p38 = por %p36, %p37
      %p39 = scmp.ne.s32.totalorder %s28, %s29
      %p40 = scmp.eq.s32.totalorder %s20, 0
      %p41 = por %p39, %p40
      %p42 = scmp.ne.s32.totalorder %s28, %s29
      %p43 = scmp.eq.s32.totalorder %s21, 2
      %p44 = por %p42, %p43
      %p46 = scmp.ne.s32.totalorder %s29, %s45
      %p47 = scmp.eq.s32.totalorder %s21, 0
      %p48 = por %p46, %p47
      %s50 = sadd.s32 %s49, 1
      %p53 = scmp.eq.s32.totalorder %s15, 2
      %p54 = scmp.ne.s32.totalorder %s49, %s51
      %p55 = scmp.eq.s32.totalorder %s15, 0
      %p56 = por %p54, %p55
      %p57 = scmp.ne.s32.totalorder %s49, %s51
      %p58 = scmp.eq.s32.totalorder %s20, 2
      %p59 = por %p57, %p58
      %p60 = scmp.ne.s32.totalorder %s51, %s52
      %p61 = scmp.eq.s32.totalorder %s20, 0
      %p62 = por %p60, %p61
      %p63 = scmp.ne.s32.totalorder %s51, %s52
      %p64 = scmp.eq.s32.totalorder %s21, 2
      %p65 = por %p63, %p64
      %p67 = scmp.ne.s32.totalorder %s52, %s66
      %p68 = scmp.eq.s32.totalorder %s21, 0
      %p69 = por %p67, %p68
      %s71 = sadd.s32 %s70, 1
      %p74 = scmp.eq.s32.totalorder %s15, 2
      %p75 = scmp.ne.s32.totalorder %s70, %s72
      %p76 = scmp.eq.s32.totalorder %s15, 0
      %p77 = por %p75, %p76
      %p78 = scmp.ne.s32.totalorder %s70, %s72
      %p79 = scmp.eq.s32.totalorder %s20, 2
      %p80 = por %p78, %p79
      %p81 = scmp.ne.s32.totalorder %s72, %s73
      %p82 = scmp.eq.s32.totalorder %s20, 0
      %p83 = por %p81, %p82
      %p84 = scmp.ne.s32.totalorder %s72, %s73
      %p85 = scmp.eq.s32.totalorder %s21, 2
      %p86 = por %p84, %p85
      %p88 = scmp.ne.s32.totalorder %s73, %s87
      %p89 = scmp.eq.s32.totalorder %s21, 0
      %p90 = por %p88, %p89
      %s92 = sadd.s32 %s91, 1
      %p95 = scmp.eq.s32.totalorder %s15, 2
      %p96 = scmp.ne.s32.totalorder %s91, %s93
      %p97 = scmp.eq.s32.totalorder %s15, 0
      %p98 = por %p96, %p97
      %p99 = scmp.ne.s32.totalorder %s91, %s93
      %p100 = scmp.eq.s32.totalorder %s20, 2
      %p101 = por %p99, %p100
      %p102 = scmp.ne.s32.totalorder %s93, %s94
      %p103 = scmp.eq.s32.totalorder %s20, 0
      %p104 = por %p102, %p103
      %p105 = scmp.ne.s32.totalorder %s93, %s94
      %p106 = scmp.eq.s32.totalorder %s21, 2
      %p107 = por %p105, %p106
      %p109 = scmp.ne.s32.totalorder %s94, %s108
      %p110 = scmp.eq.s32.totalorder %s21, 0
      %p111 = por %p109, %p110
      %s113 = sadd.s32 %s112, 1
      %p116 = scmp.eq.s32.totalorder %s15, 2
      %p117 = scmp.ne.s32.totalorder %s112, %s114
      %p118 = scmp.eq.s32.totalorder %s15, 0
      %p119 = por %p117, %p118
      %p120 = scmp.ne.s32.totalorder %s112, %s114
      %p121 = scmp.eq.s32.totalorder %s20, 2
      %p122 = por %p120, %p121
      %p123 = scmp.ne.s32.totalorder %s114, %s115
      %p124 = scmp.eq.s32.totalorder %s20, 0
      %p125 = por %p123, %p124
      %p126 = scmp.ne.s32.totalorder %s114, %s115
      %p127 = scmp.eq.s32.totalorder %s21, 2
      %p128 = por %p126, %p127
      %p130 = scmp.ne.s32.totalorder %s115, %s129
      %p131 = scmp.eq.s32.totalorder %s21, 0
      %p132 = por %p130, %p131
      %s133 = ssub.s32 %s15, %s22
      %p134 = scmp.eq.s32.totalorder %s133, 0
      %s136 = sadd.s32 %s135, 1
      %s137 = scalar_select %p134, %s135, %s136
      %p140 = pneg %p134
      %p141 = scmp.eq.s32.totalorder %s15, 2
      %p142 = por %p140, %p141
      %p143 = scmp.ne.s32.totalorder %s135, %s138
      %p144 = scmp.eq.s32.totalorder %s15, 0
      %p145 = por %p143, %p144
      %p146 = scmp.ne.s32.totalorder %s135, %s138
      %p147 = scmp.eq.s32.totalorder %s20, 2
      %p148 = por %p146, %p147
      %p149 = scmp.ne.s32.totalorder %s138, %s139
      %p150 = scmp.eq.s32.totalorder %s20, 0
      %p151 = por %p149, %p150
      %p152 = scmp.ne.s32.totalorder %s138, %s139
      %p153 = scmp.eq.s32.totalorder %s21, 2
      %p154 = por %p152, %p153
      %p156 = scmp.ne.s32.totalorder %s139, %s155
      %p157 = scmp.eq.s32.totalorder %s21, 0
      %p158 = por %p156, %p157
      %p159 = scmp.le.s32.totalorder 1, %s15
      %p160 = scmp.lt.s32.totalorder %s15, 4
      %p161 = pnand %p159, %p160
      %p162 = pneg %p161
      // Predicated region
      $region9: #{tpu_custom_call.1} parent=5 // pred_check
        _
      $region10: #{tpu_custom_call.1} parent=5 // pred_check_branch
        %164 = sbr.rel (%p161) target = $region12
      $region11: #{tpu_custom_call.1} parent=5 // pred_region
        %s165 = ssub.s32 %s15, 1
        // Predicated region
        $region13: #{tpu_custom_call.1} parent=11 // pred_check
          %p166 = pneg %p62
        $region14: #{tpu_custom_call.1} parent=11 // pred_check_branch
          %168 = sbr.rel (%p166) target = $region16
        $region15: #{tpu_custom_call.1} parent=11 // pred_region
          _
        $region16: #{tpu_custom_call.1} parent=11 // pred_fallthru
          _
        // Predicated region
        $region17: #{tpu_custom_call.1} parent=11 // pred_check
          %p169 = pneg %p83
        $region18: #{tpu_custom_call.1} parent=11 // pred_check_branch
          %171 = sbr.rel (%p169) target = $region20
        $region19: #{tpu_custom_call.1} parent=11 // pred_region
          _
        $region20: #{tpu_custom_call.1} parent=11 // pred_fallthru
          _
        // Predicated region
        $region21: #{tpu_custom_call.1} parent=11 // pred_check
          %p172 = pneg %p104
        $region22: #{tpu_custom_call.1} parent=11 // pred_check_branch
          %174 = sbr.rel (%p172) target = $region24
        $region23: #{tpu_custom_call.1} parent=11 // pred_region
          %s176 = ssub.s32 2048, 2048
          %177 = vsyncadd [#allocation3], %s176
          %s178 = sshll.u32 [#allocation2], 4
          %s179 = int_to_ptr.vmem [resolvable:$true] %s178
          %184 = dma.hbm_to_vmem [thread:$0]  %s3, 2048, %s179, [#allocation3], 64, 64, 4
        $region24: #{tpu_custom_call.1} parent=11 // pred_fallthru
          _
        // Predicated region
        $region25: #{tpu_custom_call.1} parent=11 // pred_check
          %p185 = pneg %p125
        $region26: #{tpu_custom_call.1} parent=11 // pred_check_branch
          %187 = sbr.rel (%p185) target = $region28
        $region27: #{tpu_custom_call.1} parent=11 // pred_region
          _
        $region28: #{tpu_custom_call.1} parent=11 // pred_fallthru
          _
      $region12: #{tpu_custom_call.1} parent=5 // pred_fallthru
        _
      %p188 = scmp.lt.s32.totalorder %s15, 3
      // Predicated region
      $region29: #{tpu_custom_call.1} parent=5 // pred_check
        %p189 = pneg %p188
      $region30: #{tpu_custom_call.1} parent=5 // pred_check_branch
        %191 = sbr.rel (%p189) target = $region32
      $region31: #{tpu_custom_call.1} parent=5 // pred_region
        // Predicated region
        $region33: #{tpu_custom_call.1} parent=31 // pred_check
          %p192 = pneg %p35
        $region34: #{tpu_custom_call.1} parent=31 // pred_check_branch
          %194 = sbr.rel (%p192) target = $region36
        $region35: #{tpu_custom_call.1} parent=31 // pred_region
          %s195 = smul.u32 2, %s15
          %p196 = scmp.lt.s32.totalorder %s195, 5
          %s197 = scalar_select %p196, %s195, 5
          %s198 = smul.addr %s197, 8
          %s199 = scalar_lea.vmem %s0, %s198
          %s200 = smul.u32 2, %s15
        $region36: #{tpu_custom_call.1} parent=31 // pred_fallthru
          _
      $region32: #{tpu_custom_call.1} parent=5 // pred_fallthru
        _
      %p201 = scmp.le.s32.totalorder 1, %s15
      %p202 = scmp.lt.s32.totalorder %s15, 4
      %p203 = pnand %p201, %p202
      %p204 = pneg %p203
      // Predicated region
      $region37: #{tpu_custom_call.1} parent=5 // pred_check
        _
      $region38: #{tpu_custom_call.1} parent=5 // pred_check_branch
        %206 = sbr.rel (%p203) target = $region40
      $region39: #{tpu_custom_call.1} parent=5 // pred_region
        %s207 = ssub.s32 %s15, 1
        // Predicated region
        $region41: #{tpu_custom_call.1} parent=39 // pred_check
          %p208 = pneg %p104
        $region42: #{tpu_custom_call.1} parent=39 // pred_check_branch
          %210 = sbr.rel (%p208) target = $region44
        $region43: #{tpu_custom_call.1} parent=39 // pred_region
          %211 = dma.done [#allocation3], 2048
        $region44: #{tpu_custom_call.1} parent=39 // pred_fallthru
          _
        %s212 = smul.u32 2, %s20
        %p213 = scmp.lt.s32.totalorder %s212, 5
        %s214 = scalar_select %p213, %s212, 5
        %s215 = smul.addr %s214, 8
        %s216 = scalar_lea.vmem %s0, %s215
        %p217 = pneg %p41
        %p218 = pneg %p38
        %p219 = pneg %p62
        %p220 = pneg %p59
        %p221 = pneg %p83
        %p222 = pneg %p80
        %p223 = pneg %p104
        %p224 = pneg %p101
        %p225 = pneg %p125
        %p226 = pneg %p122
        %p227 = pneg %p151
        %p228 = pneg %p148
        %s229 = sand.u32 %s138, 1
        %s230 = scalar_lea.sflag [#allocation4], %s229
        %s231 = sand.u32 %s138, 1
        %s232 = smul.addr %s231, 8
        %s233 = scalar_lea.vmem [#allocation5], %s232
        %s234 = smul.u32 2, %s20
        %p235 = scmp.lt.s32.totalorder %s234, 5
        %s236 = scalar_select %p235, %s234, 5
        %s237 = smul.addr %s236, 8
        %s238 = scalar_lea.vmem %s0, %s237
        %s239 = smul.u32 2, %s20
        %s240 = smul.u32 2, %s20
        %v242 = vld [vmem:[%s238] sm:$0xff]
        %v243 = vld [vmem:[%s238 + $0x8] sm:$0xff]
        %v244 = vpack.c.bf16 %v243, %v242
        %v245 = vld [vmem:[%s1] sm:$0xff]
        %v246 = vld [vmem:[%s1 + $0x8] sm:$0xff]
        %v247 = vld [vmem:[%s1 + $0x10] sm:$0x33]
        %v248 = vld [vmem:[%s2] sm:$0x3]
        %v250 = vlaneseq
        %v251 = vshrl.u32 %v250, 7
        %v252 = vsub.s32 0, %v251
        %v253 = vrot.slane %v248, %v252
        %v254 = vlaneseq
        %v255 = vshrl.u32 %v254, 7
        %v256 = vsub.s32 1, %v255
        %v257 = vrot.slane %v248, %v256
        %v263 = vunpack.c.l.b16 %v245
        %v264 = vunpack.c.h.b16 %v245
        %v265 = vunpack.c.l.b16 %v246
        %v266 = vunpack.c.h.b16 %v246
        %v267 = vunpack.c.l.b16 %v247
        %v268 = vunpack.c.h.b16 %v247
        %v269 = vpack.c.b16 %v265, %v263
        %v270 = vpack.c.b16 %v266, %v264
        %v271 = vpack.c.b16 %v267, %v267
        %v272 = vpack.c.b16 %v268, %v268
        %vm275 = vcmask 162816
        %v277 = vsel %vm275, %v244, 0
        %vm279 = vcmask 1041408
        %v281 = vsel %vm279, %v271, 0
        %v284 = vsel %vm279, %v272, 0
        %286 = vmatprep.subr.bf16.mxu0 %v270
        %287 = vmatpush1.bf16.msra.mxu0 %v269
        %288 = vmatprep.subr.bf16.mxu0 %v284
        %289 = vmatpush1.bf16.msra.mxu0 %v281
        %290 = vmatprep.subr.bf16.mxu0 0
        %291 = vmatpush1.bf16.msra.mxu0 0
        %292 = vmatprep.subr.bf16.mxu0 0
        %293 = vmatpush1.bf16.msra.mxu0 0
        %294 = vmatprep.subr.bf16.mxu0 0
        %295 = vmatpush1.bf16.msra.mxu0 0
        %296 = vmatprep.subr.bf16.mxu0 0
        %297 = vmatpush1.bf16.msra.mxu0 0
        %298 = vmatprep.subr.bf16.mxu0 0
        %299 = vmatpush1.bf16.msra.mxu0 0
        %300 = vmatprep.subr.bf16.mxu0 0
        %301 = vmatpush1.bf16.msra.mxu0 0
        %302 = vmatprep.subr.bf16.mxu0 0
        %303 = vmatpush1.bf16.msra.mxu0 0
        %304 = vmatprep.subr.bf16.mxu0 0
        %305 = vmatpush1.bf16.msra.mxu0 0
        %306 = vmatprep.subr.bf16.mxu0 0
        %307 = vmatpush1.bf16.msra.mxu0 0
        %308 = vmatprep.subr.bf16.mxu0 0
        %309 = vmatpush1.bf16.msra.mxu0 0
        %310 = vmatprep.subr.bf16.mxu0 0
        %311 = vmatpush1.bf16.msra.mxu0 0
        %312 = vmatprep.subr.bf16.mxu0 0
        %313 = vmatpush1.bf16.msra.mxu0 0
        %314 = vmatprep.subr.bf16.mxu0 0
        %315 = vmatpush1.bf16.msra.mxu0 0
        %316 = vmatprep.subr.bf16.mxu0 0
        %317 = vmatpush1.bf16.msra.mxu0 0
        %318 = vmatprep.mubr.bf16.mxu0 0
        %319 = vmatmul.mubr.bf16.gmra.mrb[0].mxu0 %v277
        %v320 = vpop.f32.mrb[0].mxu0
        %v321 = vadd.f32 %v253, %v320
        %v322 = vpop.f32.mrb[0].mxu0
        %v323 = vadd.f32 %v257, %v322
        %v324 = vpop.f32.mrb[0].mxu0
        %v325 = vadd.f32 %v253, %v324
        %v326 = vpop.f32.mrb[0].mxu0
        %v327 = vadd.f32 %v257, %v326
        %328 = vdwg.mxu0
        %v329 = vmax.f32 %v321, 0.0
        %v330 = vmax.f32 %v323, 0.0
        %v331 = vmax.f32 %v325, 0.0
        %v332 = vmax.f32 %v327, 0.0
        %v333 = vpack.c.bf16 %v331, %v329
        %v334 = vpack.c.bf16 %v332, %v330
        %v335 = vld [vmem:[#allocation2] sm:$0xf]
        %v336 = vld [vmem:[#allocation2 + $0x4] sm:$0xf]
        %v337 = vld [vmem:[#allocation2 + $0x8] sm:$0xf]
        %v338 = vld [vmem:[#allocation2 + $0xc] sm:$0xf]
        %v339 = vld [vmem:[#allocation2 + $0x10] sm:$0xf]
        %v340 = vld [vmem:[#allocation2 + $0x14] sm:$0xf]
        %v341 = vld [vmem:[#allocation2 + $0x18] sm:$0xf]
        %v342 = vld [vmem:[#allocation2 + $0x1c] sm:$0xf]
        %v343 = vld [vmem:[#allocation2 + $0x20] sm:$0xf]
        %v344 = vld [vmem:[#allocation2 + $0x24] sm:$0xf]
        %v345 = vld [vmem:[#allocation2 + $0x28] sm:$0xf]
        %v346 = vld [vmem:[#allocation2 + $0x2c] sm:$0xf]
        %v347 = vld [vmem:[#allocation2 + $0x30] sm:$0xf]
        %v348 = vld [vmem:[#allocation2 + $0x34] sm:$0xf]
        %v349 = vld [vmem:[#allocation2 + $0x38] sm:$0xf]
        %v350 = vld [vmem:[#allocation2 + $0x3c] sm:$0xf]
        %v351 = vld [vmem:[#allocation2 + $0x40] sm:$0xf]
        %v352 = vld [vmem:[#allocation2 + $0x44] sm:$0xf]
        %v353 = vld [vmem:[#allocation2 + $0x48] sm:$0xf]
        %v354 = vld [vmem:[#allocation2 + $0x4c] sm:$0xf]
        %v355 = vld [vmem:[#allocation2 + $0x50] sm:$0xf]
        %v356 = vld [vmem:[#allocation2 + $0x54] sm:$0xf]
        %v357 = vld [vmem:[#allocation2 + $0x58] sm:$0xf]
        %v358 = vld [vmem:[#allocation2 + $0x5c] sm:$0xf]
        %v359 = vld [vmem:[#allocation2 + $0x60] sm:$0xf]
        %v360 = vld [vmem:[#allocation2 + $0x64] sm:$0xf]
        %v361 = vld [vmem:[#allocation2 + $0x68] sm:$0xf]
        %v362 = vld [vmem:[#allocation2 + $0x6c] sm:$0xf]
        %v363 = vld [vmem:[#allocation2 + $0x70] sm:$0xf]
        %v364 = vld [vmem:[#allocation2 + $0x74] sm:$0xf]
        %v365 = vld [vmem:[#allocation2 + $0x78] sm:$0xf]
        %v366 = vld [vmem:[#allocation2 + $0x7c] sm:$0xf]
        %v367 = vld [vmem:[%s4] sm:$0x1]
        %v369 = vlaneseq
        %v370 = vshrl.u32 %v369, 7
        %v371 = vsub.s32 0, %v370
        %v372 = vrot.slane %v367, %v371
        %v406 = vunpack.c.l.b16 %v335
        %v407 = vunpack.c.l.b16 %v336
        %v408 = vunpack.c.l.b16 %v337
        %v409 = vunpack.c.l.b16 %v338
        %v410 = vunpack.c.l.b16 %v339
        %v411 = vunpack.c.l.b16 %v340
        %v412 = vunpack.c.l.b16 %v341
        %v413 = vunpack.c.l.b16 %v342
        %v414 = vunpack.c.l.b16 %v343
        %v415 = vunpack.c.l.b16 %v344
        %v416 = vunpack.c.l.b16 %v345
        %v417 = vunpack.c.l.b16 %v346
        %v418 = vunpack.c.l.b16 %v347
        %v419 = vunpack.c.l.b16 %v348
        %v420 = vunpack.c.l.b16 %v349
        %v421 = vunpack.c.l.b16 %v350
        %v422 = vunpack.c.l.b16 %v351
        %v423 = vunpack.c.l.b16 %v352
        %v424 = vunpack.c.l.b16 %v353
        %v425 = vunpack.c.l.b16 %v354
        %v426 = vunpack.c.l.b16 %v355
        %v427 = vunpack.c.l.b16 %v356
        %v428 = vunpack.c.l.b16 %v357
        %v429 = vunpack.c.l.b16 %v358
        %v430 = vunpack.c.l.b16 %v359
        %v431 = vunpack.c.l.b16 %v360
        %v432 = vunpack.c.l.b16 %v361
        %v433 = vunpack.c.l.b16 %v362
        %v434 = vunpack.c.l.b16 %v363
        %v435 = vunpack.c.l.b16 %v364
        %v436 = vunpack.c.l.b16 %v365
        %v437 = vunpack.c.l.b16 %v366
        %v438 = vpack.c.b16 %v407, %v406
        %v439 = vpack.c.b16 %v409, %v408
        %v440 = vpack.c.b16 %v411, %v410
        %v441 = vpack.c.b16 %v413, %v412
        %v442 = vpack.c.b16 %v415, %v414
        %v443 = vpack.c.b16 %v417, %v416
        %v444 = vpack.c.b16 %v419, %v418
        %v445 = vpack.c.b16 %v421, %v420
        %v446 = vpack.c.b16 %v423, %v422
        %v447 = vpack.c.b16 %v425, %v424
        %v448 = vpack.c.b16 %v427, %v426
        %v449 = vpack.c.b16 %v429, %v428
        %v450 = vpack.c.b16 %v431, %v430
        %v451 = vpack.c.b16 %v433, %v432
        %v452 = vpack.c.b16 %v435, %v434
        %v453 = vpack.c.b16 %v437, %v436
        %470 = vmatprep.subr.bf16.mxu0 0
        %471 = vmatpush1.bf16.msra.mxu0 %v438
        %472 = vmatprep.subr.bf16.mxu0 0
        %473 = vmatpush1.bf16.msra.mxu0 %v439
        %474 = vmatprep.subr.bf16.mxu0 0
        %475 = vmatpush1.bf16.msra.mxu0 %v440
        %476 = vmatprep.subr.bf16.mxu0 0
        %477 = vmatpush1.bf16.msra.mxu0 %v441
        %478 = vmatprep.subr.bf16.mxu0 0
        %479 = vmatpush1.bf16.msra.mxu0 %v442
        %480 = vmatprep.subr.bf16.mxu0 0
        %481 = vmatpush1.bf16.msra.mxu0 %v443
        %482 = vmatprep.subr.bf16.mxu0 0
        %483 = vmatpush1.bf16.msra.mxu0 %v444
        %484 = vmatprep.subr.bf16.mxu0 0
        %485 = vmatpush1.bf16.msra.mxu0 %v445
        %486 = vmatprep.subr.bf16.mxu0 0
        %487 = vmatpush1.bf16.msra.mxu0 %v446
        %488 = vmatprep.subr.bf16.mxu0 0
        %489 = vmatpush1.bf16.msra.mxu0 %v447
        %490 = vmatprep.subr.bf16.mxu0 0
        %491 = vmatpush1.bf16.msra.mxu0 %v448
        %492 = vmatprep.subr.bf16.mxu0 0
        %493 = vmatpush1.bf16.msra.mxu0 %v449
        %494 = vmatprep.subr.bf16.mxu0 0
        %495 = vmatpush1.bf16.msra.mxu0 %v450
        %496 = vmatprep.subr.bf16.mxu0 0
        %497 = vmatpush1.bf16.msra.mxu0 %v451
        %498 = vmatprep.subr.bf16.mxu0 0
        %499 = vmatpush1.bf16.msra.mxu0 %v452
        %500 = vmatprep.subr.bf16.mxu0 0
        %501 = vmatpush1.bf16.msra.mxu0 %v453
        %502 = vmatprep.mubr.bf16.mxu0 %v334
        %503 = vmatmul.mubr.bf16.gmra.mrb[0].mxu0 %v333
        %v504 = vpop.f32.mrb[0].mxu0
        %v505 = vadd.f32 %v372, %v504
        %v506 = vpop.f32.mrb[0].mxu0
        %v507 = vpop.f32.mrb[0].mxu0
        %v508 = vadd.f32 %v372, %v507
        %v509 = vpop.f32.mrb[0].mxu0
        %510 = vdwg.mxu0
        %v511 = vpack.c.bf16 %v508, %v505
        %v513 = vunpack.c.l.b16 %v511
        %v514 = vunpack.c.h.b16 %v511
        %v515 = vpack.c.b16 %v513, %v513
        %v516 = vpack.c.b16 %v514, %v514
        %519 = vst [vmem:[%s233] sm:$0xf] %v515
        %520 = vst [vmem:[%s233 + $0x4] sm:$0xf] %v516
        %s521 = sand.u32 %s138, 1
        %s522 = scalar_lea.sflag [#allocation4], %s521
        %s523 = sand.u32 %s138, 1
        %s524 = smul.addr %s523, 8
        %s525 = scalar_lea.vmem [#allocation5], %s524
        // Predicated region
        $region45: #{tpu_custom_call.1} parent=39 // pred_check
          %p526 = pneg %p148
        $region46: #{tpu_custom_call.1} parent=39 // pred_check_branch
          %528 = sbr.rel (%p526) target = $region48
        $region47: #{tpu_custom_call.1} parent=39 // pred_region
          %s529 = smul.u32 2, %s20
          %s531 = ssub.s32 128, 128
          %532 = vsyncadd %s522, %s531
          %s533 = smul.addr %s529, 64
          %s534 = scalar_lea.hbm %s5, %s533
          %s535 = sshll.u32 %s525, 4
          %s536 = int_to_ptr.vmem [resolvable:$true] %s535
          %541 = dma.vmem_to_hbm [thread:$0]  %s536, 128, %s534, %s522, 64, 64, 4
        $region48: #{tpu_custom_call.1} parent=39 // pred_fallthru
          _
      $region40: #{tpu_custom_call.1} parent=5 // pred_fallthru
        _
      %p542 = scmp.le.s32.totalorder 2, %s15
      // Predicated region
      $region49: #{tpu_custom_call.1} parent=5 // pred_check
        %p543 = pneg %p542
      $region50: #{tpu_custom_call.1} parent=5 // pred_check_branch
        %545 = sbr.rel (%p543) target = $region52
      $region51: #{tpu_custom_call.1} parent=5 // pred_region
        %s546 = ssub.s32 %s15, 2
        // Predicated region
        $region53: #{tpu_custom_call.1} parent=51 // pred_check
          %p547 = pneg %p154
        $region54: #{tpu_custom_call.1} parent=51 // pred_check_branch
          %549 = sbr.rel (%p547) target = $region56
        $region55: #{tpu_custom_call.1} parent=51 // pred_region
          %s550 = sand.u32 %s139, 1
          %s551 = scalar_lea.sflag [#allocation4], %s550
          %s552 = sand.u32 %s139, 1
          %s553 = smul.addr %s552, 8
          %s554 = scalar_lea.vmem [#allocation5], %s553
          %555 = dma.done %s551, 128
        $region56: #{tpu_custom_call.1} parent=51 // pred_fallthru
          _
      $region52: #{tpu_custom_call.1} parent=5 // pred_fallthru
        _
    $region6: #{tpu_custom_call.1} parent=1 // loop_footer
      %s19 = sadd.s32 1, %s15
    $region7: #{tpu_custom_call.1} parent=1 // loop_footer_branch
      %14 = sbr.rel target = $region3
    $region8: #{tpu_custom_call.1} parent=1 // loop_exit
      _
    %556 = vsyncpa [#allocation3], 1
    %s557 = scalar_lea.sflag [#allocation3], 1
    %558 = vsyncpa %s557, 1
    %559 = vsyncpa [#allocation4], 1
    %s560 = scalar_lea.sflag [#allocation4], 1
    %561 = vsyncpa %s560, 1

</llo_original>
